<compile_context>
chip_gen: v5e
topology: v5e:2x2
jax: 0.10.0
libtpu: 0.0.40
codegen_flags: <defaults>
</compile_context>

<pallas_src>
import jax
import jax.numpy as jnp
from jax.experimental import pallas as pl
from jax.experimental.pallas import tpu as pltpu


def _round_up(x, m):
    return ((x + m - 1) // m) * m


def _divisor_tiles(dim, align, cap):
    """All multiples of `align` that divide `dim` exactly (zero extra padding), <= cap, ascending."""
    out = []
    t = align
    limit = min(cap, dim)
    while t <= limit:
        if dim % t == 0:
            out.append(t)
        t += align
    return out


def _vmem_capacity_bytes():
    try:
        return int(pltpu.get_tpu_info().vmem_capacity_bytes)
    except Exception:
        return 64 * 1024 * 1024  # conservative default (v7x per-TensorCore VMEM)


def _select_tiles(Mp, Kp, Np, budget_bytes, tm_cap=512, tn_cap=1024, tk_cap=2048):
    """Pick (tm, tn, tk) that divide the padded dims exactly and fit the VMEM budget."""
    tm_cands = _divisor_tiles(Mp, 8, tm_cap)
    tn_cands = _divisor_tiles(Np, 128, tn_cap)
    tk_cands = _divisor_tiles(Kp, 128, tk_cap)

    def footprint(tm, tn, tk):
        # double-buffered x / W^T / bias input tiles + (conservatively double-buffered) out tile, f32
        return 4 * (2 * tm * tk + 2 * tk * tn + 2 * tn + 2 * tm * tn)

    best, best_key = None, None
    for tm in tm_cands:
        for tn in tn_cands:
            for tk in tk_cands:
                if footprint(tm, tn, tk) > budget_bytes:
                    continue
                parallel_blocks = (Mp // tm) * (Np // tn)
                key = (
                    min(parallel_blocks, 2),       # keep both v7x TensorCores busy when possible
                    tk,                            # fewest K steps -> fewest accumulator round trips
                    1 if tn % 256 == 0 else 0,     # 256-lane alignment for the v6e/v7x MXU
                    tm * tn,                       # biggest output tile -> fewest x / weight re-reads
                    tn,
                )
                if best_key is None or key > best_key:
                    best_key, best = key, (tm, tn, tk)
    if best is None:  # tiny-budget fallback: minimum legal tiles (always a few hundred KiB)
        best = (tm_cands[0], tn_cands[0], tk_cands[0])
    return best


def _fc_kernel(x_ref, w_ref, b_ref, o_ref):
    """One (i, j, k) grid step of y = x @ W^T + b.

    x_ref: (tm, tk) activation tile
    w_ref: (tk, tn) pre-transposed weight tile (plain K,N RHS -> no in-kernel transpose)
    b_ref: (1, tn)  bias tile
    o_ref: (tm, tn) f32 output tile, resident across the K axis (acts as the accumulator)
    """
    k = pl.program_id(2)
    prod = jnp.dot(x_ref[...], w_ref[...], preferred_element_type=jnp.float32)

    @pl.when(k == 0)
    def _():
        o_ref[...] = prod            # first K step: write directly (no zero-fill + reload)

    @pl.when(k > 0)
    def _():
        o_ref[...] += prod           # subsequent K steps: accumulate in place

    @pl.when(k == pl.num_programs(2) - 1)
    def _():
        o_ref[...] += b_ref[...]     # bias epilogue, once per output tile


def prepare_fc_params(weight, bias):
    """One-time conversion from PyTorch nn.Linear layout to kernel layout (do this at init).

    weight: (OUT, IN) -> W^T zero-padded to (round_up(IN,128), round_up(OUT,128))
    bias:   (OUT,)    -> (1, round_up(OUT,128)) zero-padded row
    """
    OUT, IN = weight.shape
    Kp, Np = _round_up(IN, 128), _round_up(OUT, 128)
    w_t = jnp.pad(weight.astype(jnp.float32), ((0, Np - OUT), (0, Kp - IN))).T  # (Kp, Np)
    bias2d = jnp.pad(bias.astype(jnp.float32), (0, Np - OUT)).reshape(1, Np)
    return w_t, bias2d, OUT


def fc_layer(x, w_t, bias2d, out_features):
    """y = x @ W^T + b, matching torch.nn.Linear forward.

    x:      (B, IN) float32
    w_t:    (Kp, Np) pre-transposed/padded weight from prepare_fc_params
    bias2d: (1, Np)  padded bias from prepare_fc_params
    returns (B, out_features) float32
    """
    B, IN = x.shape
    Kp, Np = w_t.shape
    assert bias2d.shape == (1, Np)
    assert Kp == _round_up(IN, 128), "w_t padding must match round_up(in_features, 128)"
    if x.dtype != jnp.float32:
        # f32 output block doubles as the accumulator; narrower dtypes would need a scratch acc.
        x = x.astype(jnp.float32)

    Mp = _round_up(B, 8)

    cap = _vmem_capacity_bytes()
    tile_budget = (cap * 3) // 4                      # ~48 MiB on v7x, ~96 MiB on v5e/v6e
    vmem_limit = int(min((cap * 7) // 8, 128 * 1024 * 1024))

    tm, tn, tk = _select_tiles(Mp, Kp, Np, tile_budget)
    grid = (Mp // tm, Np // tn, Kp // tk)

    # Only x is padded per call (weight/bias were padded once at init); zero K-padding
    # contributes nothing to the dot, padded rows/cols are sliced off below.
    if (Mp, Kp) != (B, IN):
        x = jnp.pad(x, ((0, Mp - B), (0, Kp - IN)))

    out = pl.pallas_call(
        _fc_kernel,
        out_shape=jax.ShapeDtypeStruct((Mp, Np), jnp.float32),
        grid_spec=pltpu.PrefetchScalarGridSpec(
            num_scalar_prefetch=0,
            grid=grid,
            in_specs=[
                pl.BlockSpec((tm, tk), lambda i, j, k: (i, k)),   # x tile
                pl.BlockSpec((tk, tn), lambda i, j, k: (k, j)),   # W^T tile (plain K,N RHS)
                pl.BlockSpec((1, tn), lambda i, j, k: (0, j)),    # bias tile
            ],
            out_specs=pl.BlockSpec((tm, tn), lambda i, j, k: (i, j)),
        ),
        compiler_params=pltpu.CompilerParams(
            dimension_semantics=("parallel", "parallel", "arbitrary"),
            vmem_limit_bytes=vmem_limit,
        ),
        cost_estimate=pl.CostEstimate(
            flops=2 * Mp * Kp * Np,
            transcendentals=0,
            bytes_accessed=4 * (Mp * Kp * (Np // tn) + Kp * Np * (Mp // tm) + Np + Mp * Np),
        ),
    )(x, w_t, bias2d)

    if (Mp, Np) != (B, out_features):
        out = out[:B, :out_features]
    return out


def init_fc_params(key, in_channels, out_channels):
    # kaiming_normal_(weight, mode='fan_out'): std = sqrt(2 / fan_out) = sqrt(2 / out_channels)
    std = (2.0 / out_channels) ** 0.5
    weight = jax.random.normal(key, (out_channels, in_channels), dtype=jnp.float32) * std
    bias = jnp.zeros((out_channels,), dtype=jnp.float32)  # constant_(bias, 0.0)
    return weight, bias


if __name__ == "__main__":
    key = jax.random.PRNGKey(0)
    k_x, k_w, k_x2, k_w2, k_b2 = jax.random.split(key, 5)

    # Small shape implied by the module (single Linear layer).
    B, IN, OUT = 8, 32, 64
    x = jax.random.normal(k_x, (B, IN), dtype=jnp.float32)
    weight, bias = init_fc_params(k_w, IN, OUT)
    w_t, b2d, nf = prepare_fc_params(weight, bias)
    y = jax.block_until_ready(fc_layer(x, w_t, b2d, nf))
    y_ref = jnp.dot(x, weight.T, precision=jax.lax.Precision.HIGHEST) + bias
    assert y.shape == (B, OUT)
    assert jnp.allclose(y, y_ref, atol=1e-4, rtol=1e-4)

    # Larger, non-tile-aligned shape: exercises padding, the K-accumulation loop,
    # multi-block parallel grid, and a non-zero bias epilogue.
    B2, IN2, OUT2 = 500, 2304, 750
    x2 = jax.random.normal(k_x2, (B2, IN2), dtype=jnp.float32)
    w2, _ = init_fc_params(k_w2, IN2, OUT2)
    b2 = 0.1 * jax.random.normal(k_b2, (OUT2,), dtype=jnp.float32)
    w2_t, b2_2d, nf2 = prepare_fc_params(w2, b2)
    y2 = jax.block_until_ready(fc_layer(x2, w2_t, b2_2d, nf2))
    y2_ref = jnp.dot(x2, w2.T, precision=jax.lax.Precision.HIGHEST) + b2
    assert y2.shape == (B2, OUT2)
    assert jnp.allclose(y2, y2_ref, atol=2e-3, rtol=2e-3)

    print("KERNEL_OK")
</pallas_src>

<mosaic_0001>
module attributes {stable_mosaic.version = 11 : i64} {
  func.func @_fc_kernel(%arg0: i32, %arg1: i32, %arg2: i32, %arg3: memref<8x128xf32, #tpu.memory_space<vmem>>, %arg4: memref<128x128xf32, #tpu.memory_space<vmem>>, %arg5: memref<1x128xf32, #tpu.memory_space<vmem>>, %arg6: memref<8x128xf32, #tpu.memory_space<vmem>>) attributes {dimension_semantics = [#tpu.dimension_semantics<parallel>, #tpu.dimension_semantics<parallel>, #tpu.dimension_semantics<arbitrary>], iteration_bounds = array<i64: 1, 1, 1>, scalar_prefetch = 0 : i64, scratch_operands = 0 : i64, tpu.core_type = #tpu.core_type<tc>, window_params = [{transform_indices = @transform_0, window_bounds = array<i64: 8, 128>}, {transform_indices = @transform_1, window_bounds = array<i64: 128, 128>}, {transform_indices = @transform_2, window_bounds = array<i64: 1, 128>}, {transform_indices = @transform_3, window_bounds = array<i64: 8, 128>}]} {
    %c0 = arith.constant 0 : index
    %c0_0 = arith.constant 0 : index
    %0 = vector.load %arg3[%c0, %c0_0] : memref<8x128xf32, #tpu.memory_space<vmem>>, vector<8x128xf32>
    %c0_1 = arith.constant 0 : index
    %c0_2 = arith.constant 0 : index
    %1 = vector.load %arg4[%c0_1, %c0_2] : memref<128x128xf32, #tpu.memory_space<vmem>>, vector<128x128xf32>
    %cst = arith.constant dense<0.000000e+00> : vector<8x128xf32>
    %2 = tpu.matmul %0, %1, %cst {dimension_numbers = #tpu.dot_dimension_numbers<[1], [0], [0], [1], [0, 0, 1, 1], [], []>} : vector<8x128xf32>, vector<128x128xf32>, vector<8x128xf32> -> vector<8x128xf32>
    %c0_i32 = arith.constant 0 : i32
    %3 = arith.cmpi eq, %arg2, %c0_i32 : i32
    %4 = arith.extui %3 : i1 to i32
    %c0_i32_3 = arith.constant 0 : i32
    %5 = arith.cmpi ne, %4, %c0_i32_3 : i32
    scf.if %5 {
      %c0_8 = arith.constant 0 : index
      %c0_9 = arith.constant 0 : index
      %12 = vector.load %arg6[%c0_8, %c0_9] : memref<8x128xf32, #tpu.memory_space<vmem>>, vector<8x128xf32>
      tpu.vector_store %arg6[%c0_8, %c0_9], %2 {strides = array<i32>} : memref<8x128xf32, #tpu.memory_space<vmem>>, vector<8x128xf32>,
    } else {
    }
    %c0_i32_4 = arith.constant 0 : i32
    %6 = arith.cmpi sgt, %arg2, %c0_i32_4 : i32
    %7 = arith.extui %6 : i1 to i32
    %c0_i32_5 = arith.constant 0 : i32
    %8 = arith.cmpi ne, %7, %c0_i32_5 : i32
    scf.if %8 {
      %c0_8 = arith.constant 0 : index
      %c0_9 = arith.constant 0 : index
      %12 = vector.load %arg6[%c0_8, %c0_9] : memref<8x128xf32, #tpu.memory_space<vmem>>, vector<8x128xf32>
      %13 = arith.addf %12, %2 : vector<8x128xf32>
      %c0_10 = arith.constant 0 : index
      %c0_11 = arith.constant 0 : index
      %14 = vector.load %arg6[%c0_10, %c0_11] : memref<8x128xf32, #tpu.memory_space<vmem>>, vector<8x128xf32>
      tpu.vector_store %arg6[%c0_10, %c0_11], %13 {strides = array<i32>} : memref<8x128xf32, #tpu.memory_space<vmem>>, vector<8x128xf32>,
    } else {
    }
    %c0_i32_6 = arith.constant 0 : i32
    %9 = arith.cmpi eq, %arg2, %c0_i32_6 : i32
    %10 = arith.extui %9 : i1 to i32
    %c0_i32_7 = arith.constant 0 : i32
    %11 = arith.cmpi ne, %10, %c0_i32_7 : i32
    scf.if %11 {
      %c0_8 = arith.constant 0 : index
      %c0_9 = arith.constant 0 : index
      %12 = vector.load %arg6[%c0_8, %c0_9] : memref<8x128xf32, #tpu.memory_space<vmem>>, vector<8x128xf32>
      %c0_10 = arith.constant 0 : index
      %c0_11 = arith.constant 0 : index
      %13 = vector.load %arg5[%c0_10, %c0_11] : memref<1x128xf32, #tpu.memory_space<vmem>>, vector<1x128xf32>
      %14 = vector.broadcast %13 : vector<1x128xf32> to vector<8x128xf32>
      %15 = arith.addf %12, %14 : vector<8x128xf32>
      %c0_12 = arith.constant 0 : index
      %c0_13 = arith.constant 0 : index
      %16 = vector.load %arg6[%c0_12, %c0_13] : memref<8x128xf32, #tpu.memory_space<vmem>>, vector<8x128xf32>
      tpu.vector_store %arg6[%c0_12, %c0_13], %15 {strides = array<i32>} : memref<8x128xf32, #tpu.memory_space<vmem>>, vector<8x128xf32>,
    } else {
    }
    return
  }
  func.func @transform_0(%arg0: i32, %arg1: i32, %arg2: i32) -> (i32, i32) {
    %c0_i32 = arith.constant 0 : i32
    return %arg0, %arg2 : i32, i32
  }
  func.func @transform_1(%arg0: i32, %arg1: i32, %arg2: i32) -> (i32, i32) {
    %c0_i32 = arith.constant 0 : i32
    return %arg2, %arg1 : i32, i32
  }
  func.func @transform_2(%arg0: i32, %arg1: i32, %arg2: i32) -> (i32, i32) {
    %c0_i32 = arith.constant 0 : i32
    %c0_i32_0 = arith.constant 0 : i32
    return %c0_i32, %arg1 : i32, i32
  }
  func.func @transform_3(%arg0: i32, %arg1: i32, %arg2: i32) -> (i32, i32) {
    %c0_i32 = arith.constant 0 : i32
    return %arg0, %arg1 : i32, i32
  }
}

</mosaic_0001>

<llo_original>
// kernel: tpu_custom_call.1
$region0: #{tpu_custom_call.1}
  #allocation0 [shape = 'u32[]', space=smem, size = 0x4, offset = 0x4, fixed_abs, tag = 'smem constant byte address 0x4 - core index']
  #allocation1 [shape = 'u32[72,128]{1,0:T(1,128)}', space=vmem, size = 0x9000, scoped, tag = 'internal scratch']
  %s0 = inlined_call_operand.hbm [shape: f32[8,128], index: 0, kind: input, shape index: {}]
  %s1 = inlined_call_operand.hbm [shape: f32[128,128], index: 1, kind: input, shape index: {}]
  %s2 = inlined_call_operand.vmem [shape: f32[1,128], index: 2, kind: input, shape index: {}]
  %s3 = inlined_call_operand.hbm [shape: f32[8,128], index: 3, kind: output, shape index: {}]
  %s4 = sld [smem:[#allocation0]]
  $region42: #{tpu_custom_call.1} parent=0
    _
  %s6 = ssub.s32 1, %s4
  %s7 = scalar_select 0, %s6, %s4
  $region1: #{tpu_custom_call.1} parent=0
    #allocation2 [shape = 'u8[4096]{0}', space=vmem, size = 0x1000, scoped, tag = 'input window, operand 0, single buffered']
    #allocation3 [shape = 's32[1]{0}', space=sflag, size = 0x4, scoped, tag = 'scoped memory for tpu_custom_call.1']
    #allocation4 [shape = 's32[1]{0}', space=sflag, size = 0x4, scoped, tag = 'scoped memory for tpu_custom_call.1']
    #allocation5 [shape = 'u8[65536]{0}', space=vmem, size = 0x10000, scoped, tag = 'input window, operand 1, single buffered']
    #allocation6 [shape = 's32[1]{0}', space=sflag, size = 0x4, scoped, tag = 'scoped memory for tpu_custom_call.1']
    #allocation7 [shape = 'u8[4096]{0}', space=vmem, size = 0x1000, scoped, tag = 'output window, operand 0, single buffered']
    %8 = vsyncpa [#allocation3], 0
    %9 = vsyncpa [#allocation6], 0
    %10 = vsyncpa [#allocation4], 0
    // Predicated region
    $region2: #{tpu_custom_call.1} parent=1 // pred_check
      _
    $region3: #{tpu_custom_call.1} parent=1 // pred_check_branch
      %12 = sbr.rel (0) target = $region5
    $region4: #{tpu_custom_call.1} parent=1 // pred_region
      %14 = vsyncadd [#allocation3], 0
      %s16 = sshll.u32 %s0, 4
      %s17 = int_to_ptr.hbm [resolvable:$true] %s16
      %s18 = sshll.u32 [#allocation2], 4
      %s19 = int_to_ptr.vmem [resolvable:$true] %s18
      %21 = dma.hbm_to_vmem [thread:$0]  %s17, 128, %s19, [#allocation3]
    $region5: #{tpu_custom_call.1} parent=1 // pred_fallthru
      _
    // Predicated region
    $region6: #{tpu_custom_call.1} parent=1 // pred_check
      _
    $region7: #{tpu_custom_call.1} parent=1 // pred_check_branch
      %23 = sbr.rel (0) target = $region9
    $region8: #{tpu_custom_call.1} parent=1 // pred_region
      %25 = vsyncadd [#allocation6], 0
      %s26 = sshll.u32 %s1, 4
      %s27 = int_to_ptr.hbm [resolvable:$true] %s26
      %s28 = sshll.u32 [#allocation5], 4
      %s29 = int_to_ptr.vmem [resolvable:$true] %s28
      %34 = dma.hbm_to_vmem [thread:$0]  %s27, 2048, %s29, [#allocation6], 128, 128, 8
    $region9: #{tpu_custom_call.1} parent=1 // pred_fallthru
      _
    // Predicated region
    $region10: #{tpu_custom_call.1} parent=1 // pred_check
      _
    $region11: #{tpu_custom_call.1} parent=1 // pred_check_branch
      %36 = sbr.rel (0) target = $region13
    $region12: #{tpu_custom_call.1} parent=1 // pred_region
      _
    $region13: #{tpu_custom_call.1} parent=1 // pred_fallthru
      _
    // Predicated region
    $region14: #{tpu_custom_call.1} parent=1 // pred_check
      _
    $region15: #{tpu_custom_call.1} parent=1 // pred_check_branch
      %38 = sbr.rel (0) target = $region17
    $region16: #{tpu_custom_call.1} parent=1 // pred_region
      %40 = dma.done [#allocation3], 128
    $region17: #{tpu_custom_call.1} parent=1 // pred_fallthru
      _
    // Predicated region
    $region18: #{tpu_custom_call.1} parent=1 // pred_check
      _
    $region19: #{tpu_custom_call.1} parent=1 // pred_check_branch
      %42 = sbr.rel (0) target = $region21
    $region20: #{tpu_custom_call.1} parent=1 // pred_region
      %44 = dma.done [#allocation6], 2048
    $region21: #{tpu_custom_call.1} parent=1 // pred_fallthru
      _
    %v45 = vld [vmem:[#allocation2] sm:$0xff]
    %v46 = vld [vmem:[#allocation5] sm:$0xff]
    %v47 = vld [vmem:[#allocation5 + $0x8] sm:$0xff]
    %v48 = vld [vmem:[#allocation5 + $0x10] sm:$0xff]
    %v49 = vld [vmem:[#allocation5 + $0x18] sm:$0xff]
    %v50 = vld [vmem:[#allocation5 + $0x20] sm:$0xff]
    %v51 = vld [vmem:[#allocation5 + $0x28] sm:$0xff]
    %v52 = vld [vmem:[#allocation5 + $0x30] sm:$0xff]
    %v53 = vld [vmem:[#allocation5 + $0x38] sm:$0xff]
    %v54 = vld [vmem:[#allocation5 + $0x40] sm:$0xff]
    %v55 = vld [vmem:[#allocation5 + $0x48] sm:$0xff]
    %v56 = vld [vmem:[#allocation5 + $0x50] sm:$0xff]
    %v57 = vld [vmem:[#allocation5 + $0x58] sm:$0xff]
    %v58 = vld [vmem:[#allocation5 + $0x60] sm:$0xff]
    %v59 = vld [vmem:[#allocation5 + $0x68] sm:$0xff]
    %v60 = vld [vmem:[#allocation5 + $0x70] sm:$0xff]
    %v61 = vld [vmem:[#allocation5 + $0x78] sm:$0xff]
    %62 = vmatpush.msra.mxu0 %v61
    %63 = vmatpush.msra.mxu0 %v60
    %64 = vmatpush.msra.mxu0 %v59
    %65 = vmatpush.msra.mxu0 %v58
    %66 = vmatpush.msra.mxu0 %v57
    %67 = vmatpush.msra.mxu0 %v56
    %68 = vmatpush.msra.mxu0 %v55
    %69 = vmatpush.msra.mxu0 %v54
    %70 = vmatpush.msra.mxu0 %v53
    %71 = vmatpush.msra.mxu0 %v52
    %72 = vmatpush.msra.mxu0 %v51
    %73 = vmatpush.msra.mxu0 %v50
    %74 = vmatpush.msra.mxu0 %v49
    %75 = vmatpush.msra.mxu0 %v48
    %76 = vmatpush.msra.mxu0 %v47
    %77 = vmatpush.msra.mxu0 %v46
    %78 = vmatmul.f32.gmra.mxu0 %v45
    %v79 = vpop.f32.mrf.mxu0
    %v80 = vadd.f32 0.0, %v79
    %81 = vdwg.mxu0
    %p82 = scmp.eq.s32.totalorder 0, 0
    // Predicated region
    $region22: #{tpu_custom_call.1} parent=1 // pred_check
      %p83 = pneg %p82
    $region23: #{tpu_custom_call.1} parent=1 // pred_check_branch
      %85 = sbr.rel (%p83) target = $region25
    $region24: #{tpu_custom_call.1} parent=1 // pred_region
      %86 = vst [vmem:[#allocation7] sm:$0xff] %v80
    $region25: #{tpu_custom_call.1} parent=1 // pred_fallthru
      _
    %p87 = scmp.gt.s32.totalorder 0, 0
    // Predicated region
    $region26: #{tpu_custom_call.1} parent=1 // pred_check
      %p88 = pneg %p87
    $region27: #{tpu_custom_call.1} parent=1 // pred_check_branch
      %90 = sbr.rel (%p88) target = $region29
    $region28: #{tpu_custom_call.1} parent=1 // pred_region
      %v91 = vld [vmem:[#allocation7] sm:$0xff]
      %v92 = vadd.f32 %v91, %v80
      %93 = vst [vmem:[#allocation7] sm:$0xff] %v92
    $region29: #{tpu_custom_call.1} parent=1 // pred_fallthru
      _
    // Predicated region
    $region30: #{tpu_custom_call.1} parent=1 // pred_check
      %p94 = pneg %p82
    $region31: #{tpu_custom_call.1} parent=1 // pred_check_branch
      %96 = sbr.rel (%p94) target = $region33
    $region32: #{tpu_custom_call.1} parent=1 // pred_region
      %v97 = vld [vmem:[#allocation7] sm:$0xff]
      %v98 = vld [vmem:[%s2] sm:$0x1]
      %v100 = vperm.slane %v98, 0
      %v102 = vadd.f32 %v97, %v100
      %103 = vst [vmem:[#allocation7] sm:$0xff] %v102
    $region33: #{tpu_custom_call.1} parent=1 // pred_fallthru
      _
    // Predicated region
    $region34: #{tpu_custom_call.1} parent=1 // pred_check
      _
    $region35: #{tpu_custom_call.1} parent=1 // pred_check_branch
      %105 = sbr.rel (0) target = $region37
    $region36: #{tpu_custom_call.1} parent=1 // pred_region
      %107 = vsyncadd [#allocation4], 0
      %s109 = sshll.u32 [#allocation7], 4
      %s110 = int_to_ptr.vmem [resolvable:$true] %s109
      %s111 = sshll.u32 %s3, 4
      %s112 = int_to_ptr.hbm [resolvable:$true] %s111
      %114 = dma.vmem_to_hbm [thread:$0]  %s110, 128, %s112, [#allocation4]
    $region37: #{tpu_custom_call.1} parent=1 // pred_fallthru
      _
    // Predicated region
    $region38: #{tpu_custom_call.1} parent=1 // pred_check
      _
    $region39: #{tpu_custom_call.1} parent=1 // pred_check_branch
      %116 = sbr.rel (0) target = $region41
    $region40: #{tpu_custom_call.1} parent=1 // pred_region
      %118 = dma.done [#allocation4], 128
    $region41: #{tpu_custom_call.1} parent=1 // pred_fallthru
      _
    %119 = vsyncpa [#allocation3], 1
    %120 = vsyncpa [#allocation6], 1
    %121 = vsyncpa [#allocation4], 1

</llo_original>
